<compile_context>
chip_gen: v7x
topology: tpu7x:2x2x1
jax: 0.10.0
libtpu: 0.0.40
codegen_flags: <defaults>
</compile_context>

<pallas_src>
import jax
import jax.numpy as jnp
from jax.experimental import pallas as pl
from jax.experimental.pallas import tpu as pltpu


def _feature_drop_decoder_kernel(ratio_ref, x_ref, wp_ref, b_ref, o_ref):
    # ratio_ref: SMEM (1,)      f32  threshold ratio ~ U(0.75, 0.9)
    # x_ref:     VMEM (BN,C,P)       batch chunk, channel-major
    # wp_ref:    VMEM (K+1,C)   f32  rows 0..K-1 = conv weight, row K = ones/C
    # b_ref:     VMEM (K,1)     f32  conv bias
    # o_ref:     VMEM (BN,K,P)       lane-dense output tile
    ratio = ratio_ref[0]
    wp = wp_ref[...]                                       # (K+1, C)
    bias = b_ref[...]                                      # (K, 1)
    k = o_ref.shape[1]
    bn = x_ref.shape[0]

    # Static unroll over the (small) batch chunk: each iteration is one
    # MXU matmul (K+1, C) @ (C, P) that yields conv output AND attention.
    for n in range(bn):
        xw = jnp.dot(wp, x_ref[n], preferred_element_type=jnp.float32)  # (K+1, P)
        attention = xw[k:k + 1, :]                         # (1, P) channel mean
        out = xw[:k, :]                                    # (K, P) conv result
        threshold = jnp.max(attention) * ratio             # scalar, per batch element
        # Strict '<' matches PyTorch; mask commuted onto the small output.
        o_ref[n] = (jnp.where(attention < threshold, out, 0.0) + bias
                    ).astype(o_ref.dtype)


def feature_drop_decoder(x_nchw, ratio, w_kc, b_k, *, batch_block=None):
    """FeatureDropDecoder forward.

    x_nchw: (N, C, H, W); ratio: scalar in [0.75, 0.9); w_kc: (K, C); b_k: (K,).
    batch_block: batch elements per grid step (default: whole batch if N <= 8,
    else 1).  Pass cdiv(N, 2) on v7x to split the batch across both TensorCores.
    """
    N, C, H, W = x_nchw.shape
    K = w_kc.shape[0]
    P = H * W

    if batch_block is None:
        batch_block = N if N <= 8 else 1
    bn = batch_block
    assert N % bn == 0, "batch_block must divide N"

    x_ncp = x_nchw.reshape(N, C, P)                        # pure reshape, no transpose

    # Fused weight: the channel-mean is one extra MXU output row (ones / C).
    wp = jnp.concatenate(
        [w_kc.astype(jnp.float32), jnp.full((1, C), 1.0 / C, jnp.float32)],
        axis=0)                                            # (K+1, C)
    b_k1 = b_k.reshape(K, 1).astype(jnp.float32)
    ratio_arr = jnp.asarray(ratio, jnp.float32).reshape(1)

    itemsize = jnp.dtype(x_nchw.dtype).itemsize
    cost = pl.CostEstimate(
        flops=2 * N * (K + 1) * C * P,
        transcendentals=0,
        bytes_accessed=N * C * P * itemsize            # read x
                       + N * K * P * itemsize          # write out
                       + (K + 1) * C * 4 + K * 4)      # weights + bias

    out_nkp = pl.pallas_call(
        _feature_drop_decoder_kernel,
        out_shape=jax.ShapeDtypeStruct((N, K, P), x_nchw.dtype),
        grid_spec=pltpu.PrefetchScalarGridSpec(
            num_scalar_prefetch=0,
            grid=(N // bn,),
            in_specs=[
                # scalar threshold ratio, whole (1,) array in SMEM
                pl.BlockSpec(memory_space=pltpu.MemorySpace.SMEM),
                # x: one batch chunk per step
                pl.BlockSpec((bn, C, P), lambda i: (i, 0, 0)),
                # fused conv weight / bias: resident, same block every step
                pl.BlockSpec((K + 1, C), lambda i: (0, 0)),
                pl.BlockSpec((K, 1), lambda i: (0, 0)),
            ],
            out_specs=pl.BlockSpec((bn, K, P), lambda i: (i, 0, 0)),
        ),
        compiler_params=pltpu.CompilerParams(
            dimension_semantics=("parallel",)),
        cost_estimate=cost,
    )(ratio_arr, x_ncp, wp, b_k1)

    # (N, K, P) -> (N, K, H, W): pure reshape, no transpose.
    return out_nkp.reshape(N, K, H, W)


if __name__ == "__main__":
    key = jax.random.PRNGKey(0)
    k_x, k_r, k_w, k_b = jax.random.split(key, 4)

    # Module fixes in_channels = 256 for the 1x1 conv classifier.
    N, C, H, W = 2, 256, 16, 16
    num_classes = 4

    x = jax.random.normal(k_x, (N, C, H, W), dtype=jnp.float32)

    # PyTorch samples np.random.uniform(0.75, 0.9) once per forward on the
    # host; here it is a deterministic scalar input.
    ratio = jax.random.uniform(k_r, (), jnp.float32, minval=0.75, maxval=0.9)

    # Deterministic conv parameters (Conv2d(256, num_classes, kernel_size=1)).
    w = 0.02 * jax.random.normal(k_w, (num_classes, C), dtype=jnp.float32)
    b = 0.01 * jax.random.normal(k_b, (num_classes,), dtype=jnp.float32)

    out = feature_drop_decoder(x, ratio, w, b)
    out = jax.block_until_ready(out)

    # Reference (plain JAX): feature_dropout then 1x1 conv.
    attention = jnp.mean(x, axis=1, keepdims=True)                       # (N,1,H,W)
    max_val = jnp.max(attention.reshape(N, -1), axis=1)                  # (N,)
    threshold = (max_val * ratio).reshape(N, 1, 1, 1)
    drop_mask = (attention < threshold).astype(x.dtype)
    x_dropped = x * drop_mask
    ref = jnp.einsum("nchw,kc->nkhw", x_dropped, w) + b[None, :, None, None]

    assert out.shape == (N, num_classes, H, W)
    assert jnp.allclose(out, ref, atol=1e-4, rtol=1e-4)

    print("KERNEL_OK")
</pallas_src>

<mosaic_0001>
module attributes {stable_mosaic.version = 11 : i64} {
  func.func @_feature_drop_decoder_kernel(%arg0: i32, %arg1: memref<1xf32, #tpu.memory_space<smem>>, %arg2: memref<2x256x256xf32, #tpu.memory_space<vmem>>, %arg3: memref<5x256xf32, #tpu.memory_space<vmem>>, %arg4: memref<4x1xf32, #tpu.memory_space<vmem>>, %arg5: memref<2x4x256xf32, #tpu.memory_space<vmem>>) attributes {dimension_semantics = [#tpu.dimension_semantics<parallel>], iteration_bounds = array<i64: 1>, scalar_prefetch = 0 : i64, scratch_operands = 0 : i64, tpu.core_type = #tpu.core_type<tc>, window_params = [{transform_indices = @transform_0, window_bounds = array<i64: 1>}, {transform_indices = @transform_1, window_bounds = array<i64: 2, 256, 256>}, {pipeline_mode = #tpu.pipeline_mode<synchronous>, transform_indices = @transform_2, window_bounds = array<i64: 5, 256>}, {pipeline_mode = #tpu.pipeline_mode<synchronous>, transform_indices = @transform_3, window_bounds = array<i64: 4, 1>}, {transform_indices = @transform_4, window_bounds = array<i64: 2, 4, 256>}]} {
    %c0 = arith.constant 0 : index
    %0 = memref.load %arg1[%c0] : memref<1xf32, #tpu.memory_space<smem>>
    %c0_0 = arith.constant 0 : index
    %c0_1 = arith.constant 0 : index
    %1 = vector.load %arg3[%c0_0, %c0_1] : memref<5x256xf32, #tpu.memory_space<vmem>>, vector<5x256xf32>
    %c0_2 = arith.constant 0 : index
    %c0_3 = arith.constant 0 : index
    %2 = vector.load %arg4[%c0_2, %c0_3] : memref<4x1xf32, #tpu.memory_space<vmem>>, vector<4x1xf32>
    %c0_4 = arith.constant 0 : index
    %c0_5 = arith.constant 0 : index
    %c0_6 = arith.constant 0 : index
    %3 = vector.load %arg2[%c0_4, %c0_5, %c0_6] : memref<2x256x256xf32, #tpu.memory_space<vmem>>, vector<1x256x256xf32>
    %4 = vector.shape_cast %3 : vector<1x256x256xf32> to vector<256x256xf32>
    %cst = arith.constant dense<0.000000e+00> : vector<5x256xf32>
    %5 = tpu.matmul %1, %4, %cst {dimension_numbers = #tpu.dot_dimension_numbers<[1], [0], [0], [1], [0, 0, 1, 1], [], []>} : vector<5x256xf32>, vector<256x256xf32>, vector<5x256xf32> -> vector<5x256xf32>
    %6 = vector.extract_strided_slice %5 {offsets = [4, 0], sizes = [1, 256], strides = [1, 1]} : vector<5x256xf32> to vector<1x256xf32>
    %7 = vector.extract_strided_slice %5 {offsets = [0, 0], sizes = [4, 256], strides = [1, 1]} : vector<5x256xf32> to vector<4x256xf32>
    %8 = vector.shape_cast %6 : vector<1x256xf32> to vector<1x1x256xf32>
    %cst_7 = arith.constant dense<0xFF800000> : vector<1xf32>
    %9 = vector.multi_reduction <maximumf>, %8, %cst_7 [1, 2] : vector<1x1x256xf32> to vector<1xf32>
    %10 = vector.shape_cast %9 : vector<1xf32> to vector<1x1x1xf32>
    %11 = vector.extract %10[0, 0, 0] : f32 from vector<1x1x1xf32>
    %12 = arith.mulf %11, %0 : f32
    %13 = vector.broadcast %12 : f32 to vector<1x256xf32>
    %14 = arith.cmpf olt, %6, %13 : vector<1x256xf32>
    %cst_8 = arith.constant 0.000000e+00 : f32
    %15 = vector.shape_cast %14 : vector<1x256xi1> to vector<1x256xi1>
    %16 = vector.broadcast %15 : vector<1x256xi1> to vector<4x256xi1>
    %17 = vector.broadcast %cst_8 : f32 to vector<4x256xf32>
    %18 = arith.select %16, %7, %17 : vector<4x256xi1>, vector<4x256xf32>
    %19 = vector.broadcast %2 : vector<4x1xf32> to vector<4x256xf32>
    %20 = arith.addf %18, %19 : vector<4x256xf32>
    %c0_9 = arith.constant 0 : index
    %c0_10 = arith.constant 0 : index
    %c0_11 = arith.constant 0 : index
    %21 = vector.load %arg5[%c0_9, %c0_10, %c0_11] : memref<2x4x256xf32, #tpu.memory_space<vmem>>, vector<1x4x256xf32>
    %22 = vector.shape_cast %21 : vector<1x4x256xf32> to vector<4x256xf32>
    %23 = vector.shape_cast %20 : vector<4x256xf32> to vector<1x4x256xf32>
    tpu.vector_store %arg5[%c0_9, %c0_10, %c0_11], %23 {strides = array<i32>} : memref<2x4x256xf32, #tpu.memory_space<vmem>>, vector<1x4x256xf32>,
    %c1 = arith.constant 1 : index
    %c0_12 = arith.constant 0 : index
    %c0_13 = arith.constant 0 : index
    %24 = vector.load %arg2[%c1, %c0_12, %c0_13] : memref<2x256x256xf32, #tpu.memory_space<vmem>>, vector<1x256x256xf32>
    %25 = vector.shape_cast %24 : vector<1x256x256xf32> to vector<256x256xf32>
    %cst_14 = arith.constant dense<0.000000e+00> : vector<5x256xf32>
    %26 = tpu.matmul %1, %25, %cst_14 {dimension_numbers = #tpu.dot_dimension_numbers<[1], [0], [0], [1], [0, 0, 1, 1], [], []>} : vector<5x256xf32>, vector<256x256xf32>, vector<5x256xf32> -> vector<5x256xf32>
    %27 = vector.extract_strided_slice %26 {offsets = [4, 0], sizes = [1, 256], strides = [1, 1]} : vector<5x256xf32> to vector<1x256xf32>
    %28 = vector.extract_strided_slice %26 {offsets = [0, 0], sizes = [4, 256], strides = [1, 1]} : vector<5x256xf32> to vector<4x256xf32>
    %29 = vector.shape_cast %27 : vector<1x256xf32> to vector<1x1x256xf32>
    %cst_15 = arith.constant dense<0xFF800000> : vector<1xf32>
    %30 = vector.multi_reduction <maximumf>, %29, %cst_15 [1, 2] : vector<1x1x256xf32> to vector<1xf32>
    %31 = vector.shape_cast %30 : vector<1xf32> to vector<1x1x1xf32>
    %32 = vector.extract %31[0, 0, 0] : f32 from vector<1x1x1xf32>
    %33 = arith.mulf %32, %0 : f32
    %34 = vector.broadcast %33 : f32 to vector<1x256xf32>
    %35 = arith.cmpf olt, %27, %34 : vector<1x256xf32>
    %cst_16 = arith.constant 0.000000e+00 : f32
    %36 = vector.shape_cast %35 : vector<1x256xi1> to vector<1x256xi1>
    %37 = vector.broadcast %36 : vector<1x256xi1> to vector<4x256xi1>
    %38 = vector.broadcast %cst_16 : f32 to vector<4x256xf32>
    %39 = arith.select %37, %28, %38 : vector<4x256xi1>, vector<4x256xf32>
    %40 = vector.broadcast %2 : vector<4x1xf32> to vector<4x256xf32>
    %41 = arith.addf %39, %40 : vector<4x256xf32>
    %c1_17 = arith.constant 1 : index
    %c0_18 = arith.constant 0 : index
    %c0_19 = arith.constant 0 : index
    %42 = vector.load %arg5[%c1_17, %c0_18, %c0_19] : memref<2x4x256xf32, #tpu.memory_space<vmem>>, vector<1x4x256xf32>
    %43 = vector.shape_cast %42 : vector<1x4x256xf32> to vector<4x256xf32>
    %44 = vector.shape_cast %41 : vector<4x256xf32> to vector<1x4x256xf32>
    tpu.vector_store %arg5[%c1_17, %c0_18, %c0_19], %44 {strides = array<i32>} : memref<2x4x256xf32, #tpu.memory_space<vmem>>, vector<1x4x256xf32>,
    return
  }
  func.func @transform_0(%arg0: i32) -> i32 {
    %c0_i32 = arith.constant 0 : i32
    %c0_i32_0 = arith.constant 0 : i32
    return %c0_i32 : i32
  }
  func.func @transform_1(%arg0: i32) -> (i32, i32, i32) {
    %c0_i32 = arith.constant 0 : i32
    %c0_i32_0 = arith.constant 0 : i32
    %c0_i32_1 = arith.constant 0 : i32
    return %arg0, %c0_i32, %c0_i32_0 : i32, i32, i32
  }
  func.func @transform_2(%arg0: i32) -> (i32, i32) {
    %c0_i32 = arith.constant 0 : i32
    %c0_i32_0 = arith.constant 0 : i32
    %c0_i32_1 = arith.constant 0 : i32
    return %c0_i32, %c0_i32_0 : i32, i32
  }
  func.func @transform_3(%arg0: i32) -> (i32, i32) {
    %c0_i32 = arith.constant 0 : i32
    %c0_i32_0 = arith.constant 0 : i32
    %c0_i32_1 = arith.constant 0 : i32
    return %c0_i32, %c0_i32_0 : i32, i32
  }
  func.func @transform_4(%arg0: i32) -> (i32, i32, i32) {
    %c0_i32 = arith.constant 0 : i32
    %c0_i32_0 = arith.constant 0 : i32
    %c0_i32_1 = arith.constant 0 : i32
    return %arg0, %c0_i32, %c0_i32_0 : i32, i32, i32
  }
}

</mosaic_0001>

<llo_original>
// kernel: tpu_custom_call.1
$region0: #{tpu_custom_call.1}
  #allocation0 [shape = 'u32[]', space=smem, size = 0x4, offset = 0x4, fixed_abs, tag = 'smem constant byte address 0x4 - core index']
  #allocation1 [shape = 'u32[144,128]{1,0:T(1,128)}', space=vmem, size = 0x12000, scoped, tag = 'internal scratch']
  #allocation2 [shape = 'f32[1]{0:T(128)S(6)}', space=smem, size = 0x200, scoped, tag = 'scoped memory for tpu_custom_call.1']
  %s0 = inlined_call_operand.<no memory space> [shape: f32[1], index: 0, kind: input, shape index: {}]
  %s1 = inlined_call_operand.hbm [shape: f32[2,256,256], index: 1, kind: input, shape index: {}]
  %s2 = inlined_call_operand.hbm [shape: f32[5,256], index: 2, kind: input, shape index: {}]
  %s3 = inlined_call_operand.vmem [shape: f32[4,1], index: 3, kind: input, shape index: {}]
  %s4 = inlined_call_operand.hbm [shape: f32[2,4,256], index: 4, kind: output, shape index: {}]
  %s5 = sld [smem:[#allocation0]]
  $region34: #{tpu_custom_call.1} parent=0
    _
  %s7 = ssub.s32 1, %s5
  %s8 = scalar_select 0, %s7, %s5
  %9 = sst [smem:[#allocation2]] %s0
  $region1: #{tpu_custom_call.1} parent=0
    #allocation3 [shape = 'u8[524288]{0}', space=vmem, size = 0x80000, scoped, tag = 'input window, operand 1, single buffered']
    #allocation4 [shape = 's32[1]{0}', space=sflag, size = 0x4, scoped, tag = 'scoped memory for tpu_custom_call.1']
    #allocation5 [shape = 's32[1]{0}', space=sflag, size = 0x4, scoped, tag = 'scoped memory for tpu_custom_call.1']
    #allocation6 [shape = 'u8[8192]{0}', space=vmem, size = 0x2000, scoped, tag = 'input window, operand 2, single buffered']
    #allocation7 [shape = 's32[1]{0}', space=sflag, size = 0x4, scoped, tag = 'scoped memory for tpu_custom_call.1']
    #allocation8 [shape = 'u8[8192]{0}', space=vmem, size = 0x2000, scoped, tag = 'output window, operand 0, single buffered']
    %10 = vsyncpa [#allocation4], 0
    %11 = vsyncpa [#allocation7], 0
    %12 = vsyncpa [#allocation5], 0
    // Predicated region
    $region2: #{tpu_custom_call.1} parent=1 // pred_check
      _
    $region3: #{tpu_custom_call.1} parent=1 // pred_check_branch
      %14 = sbr.rel (0) target = $region5
    $region4: #{tpu_custom_call.1} parent=1 // pred_region
      _
    $region5: #{tpu_custom_call.1} parent=1 // pred_fallthru
      _
    // Predicated region
    $region6: #{tpu_custom_call.1} parent=1 // pred_check
      _
    $region7: #{tpu_custom_call.1} parent=1 // pred_check_branch
      %16 = sbr.rel (0) target = $region9
    $region8: #{tpu_custom_call.1} parent=1 // pred_region
      %s18 = ssub.s32 16384, 16384
      %19 = vsyncadd [#allocation4], %s18
      %s20 = sshll.u32 [#allocation3], 4
      %s21 = int_to_ptr.vmem [resolvable:$true] %s20
      %26 = dma.hbm_to_vmem [thread:$0]  %s1, 16384, %s21, [#allocation4], 256, 256, 16
    $region9: #{tpu_custom_call.1} parent=1 // pred_fallthru
      _
    // Predicated region
    $region10: #{tpu_custom_call.1} parent=1 // pred_check
      _
    $region11: #{tpu_custom_call.1} parent=1 // pred_check_branch
      %28 = sbr.rel (0) target = $region13
    $region12: #{tpu_custom_call.1} parent=1 // pred_region
      %s30 = ssub.s32 256, 256
      %31 = vsyncadd [#allocation7], %s30
      %s33 = sshll.u32 [#allocation6], 4
      %s34 = int_to_ptr.vmem [resolvable:$true] %s33
      %36 = dma.hbm_to_vmem [thread:$0]  %s2, 256, %s34, [#allocation7]
    $region13: #{tpu_custom_call.1} parent=1 // pred_fallthru
      _
    // Predicated region
    $region14: #{tpu_custom_call.1} parent=1 // pred_check
      _
    $region15: #{tpu_custom_call.1} parent=1 // pred_check_branch
      %38 = sbr.rel (0) target = $region17
    $region16: #{tpu_custom_call.1} parent=1 // pred_region
      _
    $region17: #{tpu_custom_call.1} parent=1 // pred_fallthru
      _
    // Predicated region
    $region18: #{tpu_custom_call.1} parent=1 // pred_check
      _
    $region19: #{tpu_custom_call.1} parent=1 // pred_check_branch
      %40 = sbr.rel (0) target = $region21
    $region20: #{tpu_custom_call.1} parent=1 // pred_region
      %41 = dma.done [#allocation4], 16384
    $region21: #{tpu_custom_call.1} parent=1 // pred_fallthru
      _
    // Predicated region
    $region22: #{tpu_custom_call.1} parent=1 // pred_check
      _
    $region23: #{tpu_custom_call.1} parent=1 // pred_check_branch
      %43 = sbr.rel (0) target = $region25
    $region24: #{tpu_custom_call.1} parent=1 // pred_region
      %44 = dma.done [#allocation7], 256
    $region25: #{tpu_custom_call.1} parent=1 // pred_fallthru
      _
    %s45 = sld [smem:[#allocation2]]
    %v46 = vld [vmem:[#allocation6] sm:$0x1f]
    %v47 = vld [vmem:[#allocation6 + $0x8] sm:$0x1f]
    %v48 = vld [vmem:[%s3] sm:$0xf]
    %v49 = vld [vmem:[#allocation3] sm:$0xff]
    %v50 = vld [vmem:[#allocation3 + $0x8] sm:$0xff]
    %v51 = vld [vmem:[#allocation3 + $0x10] sm:$0xff]
    %v52 = vld [vmem:[#allocation3 + $0x18] sm:$0xff]
    %v53 = vld [vmem:[#allocation3 + $0x20] sm:$0xff]
    %v54 = vld [vmem:[#allocation3 + $0x28] sm:$0xff]
    %v55 = vld [vmem:[#allocation3 + $0x30] sm:$0xff]
    %v56 = vld [vmem:[#allocation3 + $0x38] sm:$0xff]
    %v57 = vld [vmem:[#allocation3 + $0x40] sm:$0xff]
    %v58 = vld [vmem:[#allocation3 + $0x48] sm:$0xff]
    %v59 = vld [vmem:[#allocation3 + $0x50] sm:$0xff]
    %v60 = vld [vmem:[#allocation3 + $0x58] sm:$0xff]
    %v61 = vld [vmem:[#allocation3 + $0x60] sm:$0xff]
    %v62 = vld [vmem:[#allocation3 + $0x68] sm:$0xff]
    %v63 = vld [vmem:[#allocation3 + $0x70] sm:$0xff]
    %v64 = vld [vmem:[#allocation3 + $0x78] sm:$0xff]
    %v65 = vld [vmem:[#allocation3 + $0x80] sm:$0xff]
    %v66 = vld [vmem:[#allocation3 + $0x88] sm:$0xff]
    %v67 = vld [vmem:[#allocation3 + $0x90] sm:$0xff]
    %v68 = vld [vmem:[#allocation3 + $0x98] sm:$0xff]
    %v69 = vld [vmem:[#allocation3 + $0xa0] sm:$0xff]
    %v70 = vld [vmem:[#allocation3 + $0xa8] sm:$0xff]
    %v71 = vld [vmem:[#allocation3 + $0xb0] sm:$0xff]
    %v72 = vld [vmem:[#allocation3 + $0xb8] sm:$0xff]
    %v73 = vld [vmem:[#allocation3 + $0xc0] sm:$0xff]
    %v74 = vld [vmem:[#allocation3 + $0xc8] sm:$0xff]
    %v75 = vld [vmem:[#allocation3 + $0xd0] sm:$0xff]
    %v76 = vld [vmem:[#allocation3 + $0xd8] sm:$0xff]
    %v77 = vld [vmem:[#allocation3 + $0xe0] sm:$0xff]
    %v78 = vld [vmem:[#allocation3 + $0xe8] sm:$0xff]
    %v79 = vld [vmem:[#allocation3 + $0xf0] sm:$0xff]
    %v80 = vld [vmem:[#allocation3 + $0xf8] sm:$0xff]
    %v81 = vld [vmem:[#allocation3 + $0x100] sm:$0xff]
    %v82 = vld [vmem:[#allocation3 + $0x108] sm:$0xff]
    %v83 = vld [vmem:[#allocation3 + $0x110] sm:$0xff]
    %v84 = vld [vmem:[#allocation3 + $0x118] sm:$0xff]
    %v85 = vld [vmem:[#allocation3 + $0x120] sm:$0xff]
    %v86 = vld [vmem:[#allocation3 + $0x128] sm:$0xff]
    %v87 = vld [vmem:[#allocation3 + $0x130] sm:$0xff]
    %v88 = vld [vmem:[#allocation3 + $0x138] sm:$0xff]
    %v89 = vld [vmem:[#allocation3 + $0x140] sm:$0xff]
    %v90 = vld [vmem:[#allocation3 + $0x148] sm:$0xff]
    %v91 = vld [vmem:[#allocation3 + $0x150] sm:$0xff]
    %v92 = vld [vmem:[#allocation3 + $0x158] sm:$0xff]
    %v93 = vld [vmem:[#allocation3 + $0x160] sm:$0xff]
    %v94 = vld [vmem:[#allocation3 + $0x168] sm:$0xff]
    %v95 = vld [vmem:[#allocation3 + $0x170] sm:$0xff]
    %v96 = vld [vmem:[#allocation3 + $0x178] sm:$0xff]
    %v97 = vld [vmem:[#allocation3 + $0x180] sm:$0xff]
    %v98 = vld [vmem:[#allocation3 + $0x188] sm:$0xff]
    %v99 = vld [vmem:[#allocation3 + $0x190] sm:$0xff]
    %v100 = vld [vmem:[#allocation3 + $0x198] sm:$0xff]
    %v101 = vld [vmem:[#allocation3 + $0x1a0] sm:$0xff]
    %v102 = vld [vmem:[#allocation3 + $0x1a8] sm:$0xff]
    %v103 = vld [vmem:[#allocation3 + $0x1b0] sm:$0xff]
    %v104 = vld [vmem:[#allocation3 + $0x1b8] sm:$0xff]
    %v105 = vld [vmem:[#allocation3 + $0x1c0] sm:$0xff]
    %v106 = vld [vmem:[#allocation3 + $0x1c8] sm:$0xff]
    %v107 = vld [vmem:[#allocation3 + $0x1d0] sm:$0xff]
    %v108 = vld [vmem:[#allocation3 + $0x1d8] sm:$0xff]
    %v109 = vld [vmem:[#allocation3 + $0x1e0] sm:$0xff]
    %v110 = vld [vmem:[#allocation3 + $0x1e8] sm:$0xff]
    %v111 = vld [vmem:[#allocation3 + $0x1f0] sm:$0xff]
    %v112 = vld [vmem:[#allocation3 + $0x1f8] sm:$0xff]
    %113 = vmatprep.subr.mxu0 %v50
    %114 = vmatpush1.msra.mxu0 %v49
    %115 = vmatprep.subr.mxu0 %v52
    %116 = vmatpush1.msra.mxu0 %v51
    %117 = vmatprep.subr.mxu0 %v54
    %118 = vmatpush1.msra.mxu0 %v53
    %119 = vmatprep.subr.mxu0 %v56
    %120 = vmatpush1.msra.mxu0 %v55
    %121 = vmatprep.subr.mxu0 %v58
    %122 = vmatpush1.msra.mxu0 %v57
    %123 = vmatprep.subr.mxu0 %v60
    %124 = vmatpush1.msra.mxu0 %v59
    %125 = vmatprep.subr.mxu0 %v62
    %126 = vmatpush1.msra.mxu0 %v61
    %127 = vmatprep.subr.mxu0 %v64
    %128 = vmatpush1.msra.mxu0 %v63
    %129 = vmatprep.subr.mxu0 %v66
    %130 = vmatpush1.msra.mxu0 %v65
    %131 = vmatprep.subr.mxu0 %v68
    %132 = vmatpush1.msra.mxu0 %v67
    %133 = vmatprep.subr.mxu0 %v70
    %134 = vmatpush1.msra.mxu0 %v69
    %135 = vmatprep.subr.mxu0 %v72
    %136 = vmatpush1.msra.mxu0 %v71
    %137 = vmatprep.subr.mxu0 %v74
    %138 = vmatpush1.msra.mxu0 %v73
    %139 = vmatprep.subr.mxu0 %v76
    %140 = vmatpush1.msra.mxu0 %v75
    %141 = vmatprep.subr.mxu0 %v78
    %142 = vmatpush1.msra.mxu0 %v77
    %143 = vmatprep.subr.mxu0 %v80
    %144 = vmatpush1.msra.mxu0 %v79
    %145 = vmatprep.subr.mxu0 %v82
    %146 = vmatpush1.msra.mxu0 %v81
    %147 = vmatprep.subr.mxu0 %v84
    %148 = vmatpush1.msra.mxu0 %v83
    %149 = vmatprep.subr.mxu0 %v86
    %150 = vmatpush1.msra.mxu0 %v85
    %151 = vmatprep.subr.mxu0 %v88
    %152 = vmatpush1.msra.mxu0 %v87
    %153 = vmatprep.subr.mxu0 %v90
    %154 = vmatpush1.msra.mxu0 %v89
    %155 = vmatprep.subr.mxu0 %v92
    %156 = vmatpush1.msra.mxu0 %v91
    %157 = vmatprep.subr.mxu0 %v94
    %158 = vmatpush1.msra.mxu0 %v93
    %159 = vmatprep.subr.mxu0 %v96
    %160 = vmatpush1.msra.mxu0 %v95
    %161 = vmatprep.subr.mxu0 %v98
    %162 = vmatpush1.msra.mxu0 %v97
    %163 = vmatprep.subr.mxu0 %v100
    %164 = vmatpush1.msra.mxu0 %v99
    %165 = vmatprep.subr.mxu0 %v102
    %166 = vmatpush1.msra.mxu0 %v101
    %167 = vmatprep.subr.mxu0 %v104
    %168 = vmatpush1.msra.mxu0 %v103
    %169 = vmatprep.subr.mxu0 %v106
    %170 = vmatpush1.msra.mxu0 %v105
    %171 = vmatprep.subr.mxu0 %v108
    %172 = vmatpush1.msra.mxu0 %v107
    %173 = vmatprep.subr.mxu0 %v110
    %174 = vmatpush1.msra.mxu0 %v109
    %175 = vmatprep.subr.mxu0 %v112
    %176 = vmatpush1.msra.mxu0 %v111
    %177 = vmatprep.mubr.f32.mxu0 %v47
    %178 = vmatmul.mubr.f32.gmra.mrb[0].mxu0 %v46
    %v179 = vpop.f32.mrb[0].mxu0
    %v180 = vadd.f32 0.0, %v179
    %v181 = vpop.f32.mrb[0].mxu0
    %v182 = vadd.f32 0.0, %v181
    %183 = vdwg.mxu0
    %vm184 = vcmask 1044484
    %v185 = vsel %vm184, %v180, -inf
    %v186 = vsel %vm184, %v182, -inf
    %v187 = vmax.f32 %v185, %v186
    %188 = vmax.xlane.f32.xlu0 %v187
    %v189 = vpop.xlane.xlu0 %188
    %v190 = vrot.slane %v189, 4
    %v191 = vmax.f32 %v189, %v190
    %v192 = vrot.slane %v191, 2
    %v193 = vmax.f32 %v191, %v192
    %v194 = vrot.slane %v193, 1
    %v195 = vmax.f32 %v193, %v194
    %s196 = vtos %v195
    %s197 = smul.f32 %s196, %s45
    %v198 = vstv %s197
    %vm199 = vcmp.lt.f32.partialorder %v180, %v198
    %vm200 = vcmp.lt.f32.partialorder %v182, %v198
    %v201 = vsel %vm199, 1, 0
    %v202 = vsel %vm200, 1, 0
    %v203 = vlaneseq
    %v204 = vshrl.u32 %v203, 7
    %v205 = vsub.s32 4, %v204
    %v206 = vrot.slane %v201, %v205
    %v207 = vlaneseq
    %v208 = vshrl.u32 %v207, 7
    %v209 = vsub.s32 4, %v208
    %v210 = vrot.slane %v202, %v209
    %vm211 = vcmp.eq.s32.totalorder %v206, 1
    %vm212 = vcmp.eq.s32.totalorder %v210, 1
    %v213 = vsel %vm211, %v180, 0.0
    %v214 = vsel %vm212, %v182, 0.0
    %216 = vset.pattern.permute.xlu0 0
    %217 = vperm.xlu0 %216, %v48
    %v218 = vpop.permute.xlu0 %217
    %v220 = vadd.f32 %v213, %v218
    %v221 = vadd.f32 %v214, %v218
    %v224 = vcombine.low %v220, %v221
    %226 = vst [vmem:[#allocation8] sm:$0xff] %v224
    %s227 = scalar_lea.vmem [#allocation3], 512
    %v228 = vld [vmem:[%s227] sm:$0xff]
    %v229 = vld [vmem:[%s227 + $0x8] sm:$0xff]
    %v230 = vld [vmem:[%s227 + $0x10] sm:$0xff]
    %v231 = vld [vmem:[%s227 + $0x18] sm:$0xff]
    %v232 = vld [vmem:[%s227 + $0x20] sm:$0xff]
    %v233 = vld [vmem:[%s227 + $0x28] sm:$0xff]
    %v234 = vld [vmem:[%s227 + $0x30] sm:$0xff]
    %v235 = vld [vmem:[%s227 + $0x38] sm:$0xff]
    %v236 = vld [vmem:[%s227 + $0x40] sm:$0xff]
    %v237 = vld [vmem:[%s227 + $0x48] sm:$0xff]
    %v238 = vld [vmem:[%s227 + $0x50] sm:$0xff]
    %v239 = vld [vmem:[%s227 + $0x58] sm:$0xff]
    %v240 = vld [vmem:[%s227 + $0x60] sm:$0xff]
    %v241 = vld [vmem:[%s227 + $0x68] sm:$0xff]
    %v242 = vld [vmem:[%s227 + $0x70] sm:$0xff]
    %v243 = vld [vmem:[%s227 + $0x78] sm:$0xff]
    %v244 = vld [vmem:[%s227 + $0x80] sm:$0xff]
    %v245 = vld [vmem:[%s227 + $0x88] sm:$0xff]
    %v246 = vld [vmem:[%s227 + $0x90] sm:$0xff]
    %v247 = vld [vmem:[%s227 + $0x98] sm:$0xff]
    %v248 = vld [vmem:[%s227 + $0xa0] sm:$0xff]
    %v249 = vld [vmem:[%s227 + $0xa8] sm:$0xff]
    %v250 = vld [vmem:[%s227 + $0xb0] sm:$0xff]
    %v251 = vld [vmem:[%s227 + $0xb8] sm:$0xff]
    %v252 = vld [vmem:[%s227 + $0xc0] sm:$0xff]
    %v253 = vld [vmem:[%s227 + $0xc8] sm:$0xff]
    %v254 = vld [vmem:[%s227 + $0xd0] sm:$0xff]
    %v255 = vld [vmem:[%s227 + $0xd8] sm:$0xff]
    %v256 = vld [vmem:[%s227 + $0xe0] sm:$0xff]
    %v257 = vld [vmem:[%s227 + $0xe8] sm:$0xff]
    %v258 = vld [vmem:[%s227 + $0xf0] sm:$0xff]
    %v259 = vld [vmem:[%s227 + $0xf8] sm:$0xff]
    %v260 = vld [vmem:[%s227 + $0x100] sm:$0xff]
    %v261 = vld [vmem:[%s227 + $0x108] sm:$0xff]
    %v262 = vld [vmem:[%s227 + $0x110] sm:$0xff]
    %v263 = vld [vmem:[%s227 + $0x118] sm:$0xff]
    %v264 = vld [vmem:[%s227 + $0x120] sm:$0xff]
    %v265 = vld [vmem:[%s227 + $0x128] sm:$0xff]
    %v266 = vld [vmem:[%s227 + $0x130] sm:$0xff]
    %v267 = vld [vmem:[%s227 + $0x138] sm:$0xff]
    %v268 = vld [vmem:[%s227 + $0x140] sm:$0xff]
    %v269 = vld [vmem:[%s227 + $0x148] sm:$0xff]
    %v270 = vld [vmem:[%s227 + $0x150] sm:$0xff]
    %v271 = vld [vmem:[%s227 + $0x158] sm:$0xff]
    %v272 = vld [vmem:[%s227 + $0x160] sm:$0xff]
    %v273 = vld [vmem:[%s227 + $0x168] sm:$0xff]
    %v274 = vld [vmem:[%s227 + $0x170] sm:$0xff]
    %v275 = vld [vmem:[%s227 + $0x178] sm:$0xff]
    %v276 = vld [vmem:[%s227 + $0x180] sm:$0xff]
    %v277 = vld [vmem:[%s227 + $0x188] sm:$0xff]
    %v278 = vld [vmem:[%s227 + $0x190] sm:$0xff]
    %v279 = vld [vmem:[%s227 + $0x198] sm:$0xff]
    %v280 = vld [vmem:[%s227 + $0x1a0] sm:$0xff]
    %v281 = vld [vmem:[%s227 + $0x1a8] sm:$0xff]
    %v282 = vld [vmem:[%s227 + $0x1b0] sm:$0xff]
    %v283 = vld [vmem:[%s227 + $0x1b8] sm:$0xff]
    %v284 = vld [vmem:[%s227 + $0x1c0] sm:$0xff]
    %v285 = vld [vmem:[%s227 + $0x1c8] sm:$0xff]
    %v286 = vld [vmem:[%s227 + $0x1d0] sm:$0xff]
    %v287 = vld [vmem:[%s227 + $0x1d8] sm:$0xff]
    %v288 = vld [vmem:[%s227 + $0x1e0] sm:$0xff]
    %v289 = vld [vmem:[%s227 + $0x1e8] sm:$0xff]
    %v290 = vld [vmem:[%s227 + $0x1f0] sm:$0xff]
    %v291 = vld [vmem:[%s227 + $0x1f8] sm:$0xff]
    %292 = vmatprep.subr.mxu0 %v229
    %293 = vmatpush1.msra.mxu0 %v228
    %294 = vmatprep.subr.mxu0 %v231
    %295 = vmatpush1.msra.mxu0 %v230
    %296 = vmatprep.subr.mxu0 %v233
    %297 = vmatpush1.msra.mxu0 %v232
    %298 = vmatprep.subr.mxu0 %v235
    %299 = vmatpush1.msra.mxu0 %v234
    %300 = vmatprep.subr.mxu0 %v237
    %301 = vmatpush1.msra.mxu0 %v236
    %302 = vmatprep.subr.mxu0 %v239
    %303 = vmatpush1.msra.mxu0 %v238
    %304 = vmatprep.subr.mxu0 %v241
    %305 = vmatpush1.msra.mxu0 %v240
    %306 = vmatprep.subr.mxu0 %v243
    %307 = vmatpush1.msra.mxu0 %v242
    %308 = vmatprep.subr.mxu0 %v245
    %309 = vmatpush1.msra.mxu0 %v244
    %310 = vmatprep.subr.mxu0 %v247
    %311 = vmatpush1.msra.mxu0 %v246
    %312 = vmatprep.subr.mxu0 %v249
    %313 = vmatpush1.msra.mxu0 %v248
    %314 = vmatprep.subr.mxu0 %v251
    %315 = vmatpush1.msra.mxu0 %v250
    %316 = vmatprep.subr.mxu0 %v253
    %317 = vmatpush1.msra.mxu0 %v252
    %318 = vmatprep.subr.mxu0 %v255
    %319 = vmatpush1.msra.mxu0 %v254
    %320 = vmatprep.subr.mxu0 %v257
    %321 = vmatpush1.msra.mxu0 %v256
    %322 = vmatprep.subr.mxu0 %v259
    %323 = vmatpush1.msra.mxu0 %v258
    %324 = vmatprep.subr.mxu0 %v261
    %325 = vmatpush1.msra.mxu0 %v260
    %326 = vmatprep.subr.mxu0 %v263
    %327 = vmatpush1.msra.mxu0 %v262
    %328 = vmatprep.subr.mxu0 %v265
    %329 = vmatpush1.msra.mxu0 %v264
    %330 = vmatprep.subr.mxu0 %v267
    %331 = vmatpush1.msra.mxu0 %v266
    %332 = vmatprep.subr.mxu0 %v269
    %333 = vmatpush1.msra.mxu0 %v268
    %334 = vmatprep.subr.mxu0 %v271
    %335 = vmatpush1.msra.mxu0 %v270
    %336 = vmatprep.subr.mxu0 %v273
    %337 = vmatpush1.msra.mxu0 %v272
    %338 = vmatprep.subr.mxu0 %v275
    %339 = vmatpush1.msra.mxu0 %v274
    %340 = vmatprep.subr.mxu0 %v277
    %341 = vmatpush1.msra.mxu0 %v276
    %342 = vmatprep.subr.mxu0 %v279
    %343 = vmatpush1.msra.mxu0 %v278
    %344 = vmatprep.subr.mxu0 %v281
    %345 = vmatpush1.msra.mxu0 %v280
    %346 = vmatprep.subr.mxu0 %v283
    %347 = vmatpush1.msra.mxu0 %v282
    %348 = vmatprep.subr.mxu0 %v285
    %349 = vmatpush1.msra.mxu0 %v284
    %350 = vmatprep.subr.mxu0 %v287
    %351 = vmatpush1.msra.mxu0 %v286
    %352 = vmatprep.subr.mxu0 %v289
    %353 = vmatpush1.msra.mxu0 %v288
    %354 = vmatprep.subr.mxu0 %v291
    %355 = vmatpush1.msra.mxu0 %v290
    %356 = vmatprep.mubr.f32.mxu0 %v47
    %357 = vmatmul.mubr.f32.gmra.mrb[0].mxu0 %v46
    %v358 = vpop.f32.mrb[0].mxu0
    %v359 = vadd.f32 0.0, %v358
    %v360 = vpop.f32.mrb[0].mxu0
    %v361 = vadd.f32 0.0, %v360
    %362 = vdwg.mxu0
    %v363 = vsel %vm184, %v359, -inf
    %v364 = vsel %vm184, %v361, -inf
    %v365 = vmax.f32 %v363, %v364
    %366 = vmax.xlane.f32.xlu0 %v365
    %v367 = vpop.xlane.xlu0 %366
    %v368 = vrot.slane %v367, 4
    %v369 = vmax.f32 %v367, %v368
    %v370 = vrot.slane %v369, 2
    %v371 = vmax.f32 %v369, %v370
    %v372 = vrot.slane %v371, 1
    %v373 = vmax.f32 %v371, %v372
    %s374 = vtos %v373
    %s375 = smul.f32 %s374, %s45
    %v376 = vstv %s375
    %vm377 = vcmp.lt.f32.partialorder %v359, %v376
    %vm378 = vcmp.lt.f32.partialorder %v361, %v376
    %v379 = vsel %vm377, 1, 0
    %v380 = vsel %vm378, 1, 0
    %v381 = vlaneseq
    %v382 = vshrl.u32 %v381, 7
    %v383 = vsub.s32 4, %v382
    %v384 = vrot.slane %v379, %v383
    %v385 = vlaneseq
    %v386 = vshrl.u32 %v385, 7
    %v387 = vsub.s32 4, %v386
    %v388 = vrot.slane %v380, %v387
    %vm389 = vcmp.eq.s32.totalorder %v384, 1
    %vm390 = vcmp.eq.s32.totalorder %v388, 1
    %v391 = vsel %vm389, %v359, 0.0
    %v392 = vsel %vm390, %v361, 0.0
    %v393 = vadd.f32 %v391, %v218
    %v394 = vadd.f32 %v392, %v218
    %v397 = vcombine.low %v393, %v394
    %s399 = scalar_lea.vmem [#allocation8], 8
    %400 = vst [vmem:[%s399] sm:$0xff] %v397
    // Predicated region
    $region26: #{tpu_custom_call.1} parent=1 // pred_check
      _
    $region27: #{tpu_custom_call.1} parent=1 // pred_check_branch
      %402 = sbr.rel (0) target = $region29
    $region28: #{tpu_custom_call.1} parent=1 // pred_region
      %s404 = ssub.s32 256, 256
      %405 = vsyncadd [#allocation5], %s404
      %s406 = sshll.u32 [#allocation8], 4
      %s407 = int_to_ptr.vmem [resolvable:$true] %s406
      %412 = dma.vmem_to_hbm [thread:$0]  %s407, 256, %s4, [#allocation5], 128, 128, 8
    $region29: #{tpu_custom_call.1} parent=1 // pred_fallthru
      _
    // Predicated region
    $region30: #{tpu_custom_call.1} parent=1 // pred_check
      _
    $region31: #{tpu_custom_call.1} parent=1 // pred_check_branch
      %414 = sbr.rel (0) target = $region33
    $region32: #{tpu_custom_call.1} parent=1 // pred_region
      %415 = dma.done [#allocation5], 256
    $region33: #{tpu_custom_call.1} parent=1 // pred_fallthru
      _
    %416 = vsyncpa [#allocation4], 1
    %417 = vsyncpa [#allocation7], 1
    %418 = vsyncpa [#allocation5], 1

</llo_original>
